<compile_context>
chip_gen: v6e
topology: v6e:2x2x1
jax: 0.10.0
libtpu: 0.0.40
codegen_flags: <defaults>
</compile_context>

<pallas_src>
import functools

import jax
import jax.numpy as jnp
from jax import lax
from jax.experimental import pallas as pl
from jax.experimental.pallas import tpu as pltpu


def _gru_seq_kernel(x_ref,      # (L, H)   gathered embedding rows (bf16)
                    h0_ref,     # (1, H)   initial hidden, f32
                    wih_ref,    # (H, 3H)  W_ih^T (bf16)
                    whh_ref,    # (H, 3H)  W_hh^T (bf16)
                    brz_ref,    # (1, 3H)  [b_ir+b_hr, b_iz+b_hz, b_in]  f32
                    bhn_ref,    # (1, H)   b_hn                          f32
                    hout_ref,   # (1, H)   final hidden, f32
                    gi_scr):    # VMEM scratch (L, 3H) f32
    L, H = x_ref.shape

    # ---- Hoisted input projection: ONE batched MXU matmul for all L tokens,
    #      with all input-side biases (and the summed r/z hh biases) folded in.
    gi_scr[...] = (
        jnp.dot(x_ref[...], wih_ref[...], preferred_element_type=jnp.float32)
        + brz_ref[...])

    bhn = bhn_ref[...]              # (1, H) f32, loop-invariant (hoisted)
    w_dtype = whh_ref.dtype

    def step(t, h):
        # h: (1, H) f32 carried in vregs — no VMEM round-trip per token.
        gi = gi_scr[pl.ds(t, 1), :]                          # (1, 3H) f32
        gh = jnp.dot(h.astype(w_dtype), whh_ref[...],
                     preferred_element_type=jnp.float32)     # (1, 3H) f32
        # PyTorch GRU cell, gate order [r, z, n]; n-gate hh-bias under r*(...)
        rz = jax.nn.sigmoid(gi[:, 0:2 * H] + gh[:, 0:2 * H])
        r = rz[:, 0:H]
        z = rz[:, H:2 * H]
        n = jnp.tanh(gi[:, 2 * H:3 * H] + r * (gh[:, 2 * H:3 * H] + bhn))
        return (1.0 - z) * n + z * h

    unroll = True if L <= 16 else 8
    h_final = lax.fori_loop(0, L, step, h0_ref[...], unroll=unroll)
    hout_ref[...] = h_final.astype(hout_ref.dtype)


@jax.jit
def _encode_sequence(tokens, hidden, emb, wih_t, whh_t, brz, bhn):
    """Run the GRU encoder over `tokens` (shape (L,)) in ONE pallas_call."""
    V, H = emb.shape
    L = tokens.shape[0]
    toks = jnp.clip(tokens.astype(jnp.int32), 0, V - 1)   # bounds-safe gather
    x_slab = jnp.take(emb, toks, axis=0)                  # (L, H) tiny XLA gather
    h0 = hidden.reshape(1, H).astype(jnp.float32)

    h_new = pl.pallas_call(
        _gru_seq_kernel,
        out_shape=jax.ShapeDtypeStruct((1, H), jnp.float32),
        grid=(1,),
        in_specs=[
            pl.BlockSpec((L, H), lambda i: (0, 0)),          # embedding slab
            pl.BlockSpec((1, H), lambda i: (0, 0)),          # h0
            pl.BlockSpec((H, 3 * H), lambda i: (0, 0)),      # W_ih^T
            pl.BlockSpec((H, 3 * H), lambda i: (0, 0)),      # W_hh^T
            pl.BlockSpec((1, 3 * H), lambda i: (0, 0)),      # folded biases
            pl.BlockSpec((1, H), lambda i: (0, 0)),          # b_hn
        ],
        out_specs=pl.BlockSpec((1, H), lambda i: (0, 0)),
        scratch_shapes=[pltpu.VMEM((L, 3 * H), jnp.float32)],
        compiler_params=pltpu.CompilerParams(
            dimension_semantics=("arbitrary",)),   # single sequential step
    )(x_slab, h0, wih_t, whh_t, brz, bhn)

    return h_new.reshape(1, 1, H)


def encoder_forward(token, hidden, params):
    """Encoder.forward: one token step. Returns new hidden of shape (1,1,H)."""
    tok = jnp.asarray(token, jnp.int32).reshape(1)
    return _encode_sequence(tok, hidden, params["emb"], params["wih_t"],
                            params["whh_t"], params["brz"], params["bhn"])


def encoder_sample(seq_list, params):
    """Encoder.sample: whole sequence, zero initial hidden, ONE kernel launch."""
    H = params["emb"].shape[-1]
    tokens = jnp.asarray(seq_list, jnp.int32)
    h0 = jnp.zeros((1, 1, H), jnp.float32)                # initHidden
    return _encode_sequence(tokens, h0, params["emb"], params["wih_t"],
                            params["whh_t"], params["brz"], params["bhn"])


def init_params(key, input_size, hidden_size, param_dtype=jnp.bfloat16):
    """PyTorch-shaped init, re-laid-out for the kernel."""
    H = hidden_size
    assert H % 128 == 0, "hidden_size must be a multiple of 128 (lane-aligned gates)"
    k_emb, k_wih, k_whh, k_bih, k_bhh = jax.random.split(key, 5)
    bound = 1.0 / (H ** 0.5)
    emb = jax.random.normal(k_emb, (input_size, H), jnp.float32)   # ~nn.Embedding
    wih = jax.random.uniform(k_wih, (3 * H, H), jnp.float32, -bound, bound)
    whh = jax.random.uniform(k_whh, (3 * H, H), jnp.float32, -bound, bound)
    bih = jax.random.uniform(k_bih, (3 * H,), jnp.float32, -bound, bound)
    bhh = jax.random.uniform(k_bhh, (3 * H,), jnp.float32, -bound, bound)

    return {
        "emb": emb.astype(param_dtype),                    # (V, H)
        "wih_t": wih.T.astype(param_dtype),                # (H, 3H)
        "whh_t": whh.T.astype(param_dtype),                # (H, 3H)
        # [b_ir+b_hr, b_iz+b_hz, b_in]  — folded into the batched GI projection
        "brz": jnp.concatenate([bih[:2 * H] + bhh[:2 * H], bih[2 * H:]]
                               ).reshape(1, 3 * H).astype(jnp.float32),
        # b_hn stays separate (lives inside the r*(...) term)
        "bhn": bhh[2 * H:].reshape(1, H).astype(jnp.float32),
        # raw f32 weights kept only for the pure-JAX reference check
        "_raw": {"emb": emb, "wih": wih, "whh": whh, "bih": bih, "bhh": bhh},
    }


def _reference_run(tokens, hidden, params):
    """Pure-JAX replica of the PyTorch GRU recurrence (unfused layout).

    Uses the same low-precision weights the kernel sees (matmuls in the param
    dtype, f32 accumulation) so the comparison isolates kernel correctness.
    """
    raw = params["_raw"]
    dtype = params["wih_t"].dtype
    H = raw["emb"].shape[-1]
    emb = raw["emb"].astype(dtype)
    wih_t = raw["wih"].T.astype(dtype)
    whh_t = raw["whh"].T.astype(dtype)
    bih = raw["bih"].reshape(1, 3 * H)
    bhh = raw["bhh"].reshape(1, 3 * H)
    h = hidden.reshape(1, H).astype(jnp.float32)
    for t in list(jnp.asarray(tokens, jnp.int32)):
        x = emb[t].reshape(1, H)
        gi = jnp.dot(x, wih_t, preferred_element_type=jnp.float32) + bih
        gh = jnp.dot(h.astype(dtype), whh_t, preferred_element_type=jnp.float32) + bhh
        r = jax.nn.sigmoid(gi[:, :H] + gh[:, :H])
        z = jax.nn.sigmoid(gi[:, H:2 * H] + gh[:, H:2 * H])
        n = jnp.tanh(gi[:, 2 * H:] + r * gh[:, 2 * H:])
        h = (1.0 - z) * n + z * h
    return h.reshape(1, 1, H)


if __name__ == "__main__":
    input_size = 100      # vocab size (module's `input_size`)
    hidden_size = 256     # tutorial's hidden_size; multiple of 128

    key = jax.random.PRNGKey(0)
    params = init_params(key, input_size, hidden_size)

    # --- single forward step (Encoder.forward) ---
    token = jnp.int32(42)
    h0 = jnp.zeros((1, 1, hidden_size), jnp.float32)
    h1 = jax.block_until_ready(encoder_forward(token, h0, params))
    h1_ref = _reference_run([42], h0, params)
    assert h1.shape == (1, 1, hidden_size)
    assert jnp.allclose(h1, h1_ref, atol=2e-3, rtol=2e-3), \
        float(jnp.max(jnp.abs(h1 - h1_ref)))

    # --- whole sequence, ONE pallas_call / ONE kernel invocation (Encoder.sample) ---
    seq = [1, 42, 7, 99, 0, 13, 64, 5]
    h_final = jax.block_until_ready(encoder_sample(seq, params))
    h_ref = _reference_run(seq, jnp.zeros((1, 1, hidden_size), jnp.float32), params)
    assert h_final.shape == (1, 1, hidden_size)
    assert jnp.allclose(h_final, h_ref, atol=2e-3, rtol=2e-3), \
        float(jnp.max(jnp.abs(h_final - h_ref)))

    # TODO(synk): training loop / optimizer of the tutorial is out of scope
    # (only the Encoder forward pass / sample() recurrence is implemented).
    print("KERNEL_OK")
</pallas_src>

<mosaic_0001>
module attributes {stable_mosaic.version = 11 : i64} {
  func.func @_gru_seq_kernel(%arg0: i32, %arg1: memref<1x256xbf16, #tpu.memory_space<vmem>>, %arg2: memref<1x256xf32, #tpu.memory_space<vmem>>, %arg3: memref<256x768xbf16, #tpu.memory_space<vmem>>, %arg4: memref<256x768xbf16, #tpu.memory_space<vmem>>, %arg5: memref<1x768xf32, #tpu.memory_space<vmem>>, %arg6: memref<1x256xf32, #tpu.memory_space<vmem>>, %arg7: memref<1x256xf32, #tpu.memory_space<vmem>>, %arg8: memref<1x768xf32, #tpu.memory_space<vmem>>) attributes {dimension_semantics = [#tpu.dimension_semantics<arbitrary>], iteration_bounds = array<i64: 1>, scalar_prefetch = 0 : i64, scratch_operands = 1 : i64, tpu.core_type = #tpu.core_type<tc>, window_params = [{pipeline_mode = #tpu.pipeline_mode<synchronous>, transform_indices = @transform_0, window_bounds = array<i64: 1, 256>}, {pipeline_mode = #tpu.pipeline_mode<synchronous>, transform_indices = @transform_1, window_bounds = array<i64: 1, 256>}, {pipeline_mode = #tpu.pipeline_mode<synchronous>, transform_indices = @transform_2, window_bounds = array<i64: 256, 768>}, {pipeline_mode = #tpu.pipeline_mode<synchronous>, transform_indices = @transform_3, window_bounds = array<i64: 256, 768>}, {pipeline_mode = #tpu.pipeline_mode<synchronous>, transform_indices = @transform_4, window_bounds = array<i64: 1, 768>}, {pipeline_mode = #tpu.pipeline_mode<synchronous>, transform_indices = @transform_5, window_bounds = array<i64: 1, 256>}, {pipeline_mode = #tpu.pipeline_mode<synchronous>, transform_indices = @transform_6, window_bounds = array<i64: 1, 256>}]} {
    %c0 = arith.constant 0 : index
    %c0_0 = arith.constant 0 : index
    %0 = vector.load %arg1[%c0, %c0_0] : memref<1x256xbf16, #tpu.memory_space<vmem>>, vector<1x256xbf16>
    %c0_1 = arith.constant 0 : index
    %c0_2 = arith.constant 0 : index
    %1 = vector.load %arg3[%c0_1, %c0_2] : memref<256x768xbf16, #tpu.memory_space<vmem>>, vector<256x768xbf16>
    %cst = arith.constant dense<0.000000e+00> : vector<1x768xf32>
    %2 = tpu.matmul %0, %1, %cst {dimension_numbers = #tpu.dot_dimension_numbers<[1], [0], [0], [1], [0, 0, 1, 1], [], []>} : vector<1x256xbf16>, vector<256x768xbf16>, vector<1x768xf32> -> vector<1x768xf32>
    %c0_3 = arith.constant 0 : index
    %c0_4 = arith.constant 0 : index
    %3 = vector.load %arg5[%c0_3, %c0_4] : memref<1x768xf32, #tpu.memory_space<vmem>>, vector<1x768xf32>
    %4 = arith.addf %2, %3 : vector<1x768xf32>
    %c0_5 = arith.constant 0 : index
    %c0_6 = arith.constant 0 : index
    %5 = vector.load %arg8[%c0_5, %c0_6] : memref<1x768xf32, #tpu.memory_space<vmem>>, vector<1x768xf32>
    tpu.vector_store %arg8[%c0_5, %c0_6], %4 {strides = array<i32>} : memref<1x768xf32, #tpu.memory_space<vmem>>, vector<1x768xf32>,
    %c0_7 = arith.constant 0 : index
    %c0_8 = arith.constant 0 : index
    %6 = vector.load %arg6[%c0_7, %c0_8] : memref<1x256xf32, #tpu.memory_space<vmem>>, vector<1x256xf32>
    %c0_9 = arith.constant 0 : index
    %c0_10 = arith.constant 0 : index
    %7 = vector.load %arg2[%c0_9, %c0_10] : memref<1x256xf32, #tpu.memory_space<vmem>>, vector<1x256xf32>
    %c0_i32 = arith.constant 0 : i32
    %8 = arith.index_cast %c0_i32 : i32 to index
    %c0_11 = arith.constant 0 : index
    %9 = vector.load %arg8[%8, %c0_11] : memref<1x768xf32, #tpu.memory_space<vmem>>, vector<1x768xf32>
    %10 = arith.truncf %7 : vector<1x256xf32> to vector<1x256xbf16>
    %c0_12 = arith.constant 0 : index
    %c0_13 = arith.constant 0 : index
    %11 = vector.load %arg4[%c0_12, %c0_13] : memref<256x768xbf16, #tpu.memory_space<vmem>>, vector<256x768xbf16>
    %cst_14 = arith.constant dense<0.000000e+00> : vector<1x768xf32>
    %12 = tpu.matmul %10, %11, %cst_14 {dimension_numbers = #tpu.dot_dimension_numbers<[1], [0], [0], [1], [0, 0, 1, 1], [], []>} : vector<1x256xbf16>, vector<256x768xbf16>, vector<1x768xf32> -> vector<1x768xf32>
    %13 = vector.extract_strided_slice %9 {offsets = [0, 0], sizes = [1, 512], strides = [1, 1]} : vector<1x768xf32> to vector<1x512xf32>
    %14 = vector.extract_strided_slice %12 {offsets = [0, 0], sizes = [1, 512], strides = [1, 1]} : vector<1x768xf32> to vector<1x512xf32>
    %15 = arith.addf %13, %14 : vector<1x512xf32>
    %16 = arith.negf %15 : vector<1x512xf32>
    %17 = math.exp %16 : vector<1x512xf32>
    %cst_15 = arith.constant 1.000000e+00 : f32
    %18 = vector.broadcast %cst_15 : f32 to vector<1x512xf32>
    %19 = arith.addf %18, %17 : vector<1x512xf32>
    %20 = arith.divf %18, %19 : vector<1x512xf32>
    %21 = vector.extract_strided_slice %20 {offsets = [0, 0], sizes = [1, 256], strides = [1, 1]} : vector<1x512xf32> to vector<1x256xf32>
    %22 = vector.extract_strided_slice %20 {offsets = [0, 256], sizes = [1, 256], strides = [1, 1]} : vector<1x512xf32> to vector<1x256xf32>
    %23 = vector.extract_strided_slice %9 {offsets = [0, 512], sizes = [1, 256], strides = [1, 1]} : vector<1x768xf32> to vector<1x256xf32>
    %24 = vector.extract_strided_slice %12 {offsets = [0, 512], sizes = [1, 256], strides = [1, 1]} : vector<1x768xf32> to vector<1x256xf32>
    %25 = arith.addf %24, %6 : vector<1x256xf32>
    %26 = arith.mulf %21, %25 : vector<1x256xf32>
    %27 = arith.addf %23, %26 : vector<1x256xf32>
    %28 = math.tanh %27 : vector<1x256xf32>
    %cst_16 = arith.constant 1.000000e+00 : f32
    %29 = vector.broadcast %cst_16 : f32 to vector<1x256xf32>
    %30 = arith.subf %29, %22 : vector<1x256xf32>
    %31 = arith.mulf %30, %28 : vector<1x256xf32>
    %32 = arith.mulf %22, %7 : vector<1x256xf32>
    %33 = arith.addf %31, %32 : vector<1x256xf32>
    %c1_i32 = arith.constant 1 : i32
    %c0_17 = arith.constant 0 : index
    %c0_18 = arith.constant 0 : index
    %34 = vector.load %arg7[%c0_17, %c0_18] : memref<1x256xf32, #tpu.memory_space<vmem>>, vector<1x256xf32>
    tpu.vector_store %arg7[%c0_17, %c0_18], %33 {strides = array<i32>} : memref<1x256xf32, #tpu.memory_space<vmem>>, vector<1x256xf32>,
    return
  }
  func.func @transform_0(%arg0: i32) -> (i32, i32) {
    %c0_i32 = arith.constant 0 : i32
    %c0_i32_0 = arith.constant 0 : i32
    %c0_i32_1 = arith.constant 0 : i32
    return %c0_i32, %c0_i32_0 : i32, i32
  }
  func.func @transform_1(%arg0: i32) -> (i32, i32) {
    %c0_i32 = arith.constant 0 : i32
    %c0_i32_0 = arith.constant 0 : i32
    %c0_i32_1 = arith.constant 0 : i32
    return %c0_i32, %c0_i32_0 : i32, i32
  }
  func.func @transform_2(%arg0: i32) -> (i32, i32) {
    %c0_i32 = arith.constant 0 : i32
    %c0_i32_0 = arith.constant 0 : i32
    %c0_i32_1 = arith.constant 0 : i32
    return %c0_i32, %c0_i32_0 : i32, i32
  }
  func.func @transform_3(%arg0: i32) -> (i32, i32) {
    %c0_i32 = arith.constant 0 : i32
    %c0_i32_0 = arith.constant 0 : i32
    %c0_i32_1 = arith.constant 0 : i32
    return %c0_i32, %c0_i32_0 : i32, i32
  }
  func.func @transform_4(%arg0: i32) -> (i32, i32) {
    %c0_i32 = arith.constant 0 : i32
    %c0_i32_0 = arith.constant 0 : i32
    %c0_i32_1 = arith.constant 0 : i32
    return %c0_i32, %c0_i32_0 : i32, i32
  }
  func.func @transform_5(%arg0: i32) -> (i32, i32) {
    %c0_i32 = arith.constant 0 : i32
    %c0_i32_0 = arith.constant 0 : i32
    %c0_i32_1 = arith.constant 0 : i32
    return %c0_i32, %c0_i32_0 : i32, i32
  }
  func.func @transform_6(%arg0: i32) -> (i32, i32) {
    %c0_i32 = arith.constant 0 : i32
    %c0_i32_0 = arith.constant 0 : i32
    %c0_i32_1 = arith.constant 0 : i32
    return %c0_i32, %c0_i32_0 : i32, i32
  }
}

</mosaic_0001>

<llo_original>
// kernel: _encode_sequence.1
$region0: #{_encode_sequence.1}
  #allocation0 [shape = 'u32[]', space=smem, size = 0x4, offset = 0x4, fixed_abs, tag = 'smem constant byte address 0x4 - core index']
  #allocation1 [shape = 'u32[144,128]{1,0:T(1,128)}', space=vmem, size = 0x12000, scoped, tag = 'internal scratch']
  #allocation2 [shape = 'f32[1,768]{1,0:T(1,128)}', space=vmem, size = 0xc00, scoped, tag = 'scratch operand']
  %s0 = inlined_call_operand.vmem [shape: bf16[1,256], index: 0, kind: input, shape index: {}]
  %s1 = inlined_call_operand.vmem [shape: f32[1,256], index: 1, kind: input, shape index: {}]
  %s2 = inlined_call_operand.hbm [shape: bf16[256,768], index: 2, kind: input, shape index: {}]
  %s3 = inlined_call_operand.hbm [shape: bf16[256,768], index: 3, kind: input, shape index: {}]
  %s4 = inlined_call_operand.vmem [shape: f32[1,768], index: 4, kind: input, shape index: {}]
  %s5 = inlined_call_operand.vmem [shape: f32[1,256], index: 5, kind: input, shape index: {}]
  %s6 = inlined_call_operand.hbm [shape: f32[1,256], index: 6, kind: output, shape index: {}]
  %s7 = sld [smem:[#allocation0]]
  $region42: #{_encode_sequence.1} parent=0
    _
  %s9 = ssub.s32 1, %s7
  %s10 = scalar_select 0, %s9, %s7
  $region1: #{_encode_sequence.1} parent=0
    #allocation3 [shape = 'u8[393216]{0}', space=vmem, size = 0x60000, scoped, tag = 'input window, operand 2, single buffered']
    #allocation4 [shape = 's32[1]{0}', space=sflag, size = 0x4, scoped, tag = 'scoped memory for _encode_sequence.1']
    #allocation5 [shape = 's32[1]{0}', space=sflag, size = 0x4, scoped, tag = 'scoped memory for _encode_sequence.1']
    #allocation6 [shape = 'u8[393216]{0}', space=vmem, size = 0x60000, scoped, tag = 'input window, operand 3, single buffered']
    #allocation7 [shape = 's32[1]{0}', space=sflag, size = 0x4, scoped, tag = 'scoped memory for _encode_sequence.1']
    #allocation8 [shape = 'u8[1024]{0}', space=vmem, size = 0x400, scoped, tag = 'output window, operand 0, single buffered']
    %11 = vsyncpa [#allocation4], 0
    %12 = vsyncpa [#allocation7], 0
    %13 = vsyncpa [#allocation5], 0
    // Predicated region
    $region2: #{_encode_sequence.1} parent=1 // pred_check
      _
    $region3: #{_encode_sequence.1} parent=1 // pred_check_branch
      %15 = sbr.rel (0) target = $region5
    $region4: #{_encode_sequence.1} parent=1 // pred_region
      _
    $region5: #{_encode_sequence.1} parent=1 // pred_fallthru
      _
    // Predicated region
    $region6: #{_encode_sequence.1} parent=1 // pred_check
      _
    $region7: #{_encode_sequence.1} parent=1 // pred_check_branch
      %17 = sbr.rel (0) target = $region9
    $region8: #{_encode_sequence.1} parent=1 // pred_region
      _
    $region9: #{_encode_sequence.1} parent=1 // pred_fallthru
      _
    // Predicated region
    $region10: #{_encode_sequence.1} parent=1 // pred_check
      _
    $region11: #{_encode_sequence.1} parent=1 // pred_check_branch
      %19 = sbr.rel (0) target = $region13
    $region12: #{_encode_sequence.1} parent=1 // pred_region
      %s21 = ssub.s32 12288, 12288
      %22 = vsyncadd [#allocation4], %s21
      %s23 = sshll.u32 [#allocation3], 4
      %s24 = int_to_ptr.vmem [resolvable:$true] %s23
      %29 = dma.hbm_to_vmem [thread:$0]  %s2, 12288, %s24, [#allocation4], 384, 384, 24
    $region13: #{_encode_sequence.1} parent=1 // pred_fallthru
      _
    // Predicated region
    $region14: #{_encode_sequence.1} parent=1 // pred_check
      _
    $region15: #{_encode_sequence.1} parent=1 // pred_check_branch
      %31 = sbr.rel (0) target = $region17
    $region16: #{_encode_sequence.1} parent=1 // pred_region
      %s33 = ssub.s32 12288, 12288
      %34 = vsyncadd [#allocation7], %s33
      %s35 = sshll.u32 [#allocation6], 4
      %s36 = int_to_ptr.vmem [resolvable:$true] %s35
      %41 = dma.hbm_to_vmem [thread:$0]  %s3, 12288, %s36, [#allocation7], 384, 384, 24
    $region17: #{_encode_sequence.1} parent=1 // pred_fallthru
      _
    // Predicated region
    $region18: #{_encode_sequence.1} parent=1 // pred_check
      _
    $region19: #{_encode_sequence.1} parent=1 // pred_check_branch
      %43 = sbr.rel (0) target = $region21
    $region20: #{_encode_sequence.1} parent=1 // pred_region
      _
    $region21: #{_encode_sequence.1} parent=1 // pred_fallthru
      _
    // Predicated region
    $region22: #{_encode_sequence.1} parent=1 // pred_check
      _
    $region23: #{_encode_sequence.1} parent=1 // pred_check_branch
      %45 = sbr.rel (0) target = $region25
    $region24: #{_encode_sequence.1} parent=1 // pred_region
      _
    $region25: #{_encode_sequence.1} parent=1 // pred_fallthru
      _
    // Predicated region
    $region26: #{_encode_sequence.1} parent=1 // pred_check
      _
    $region27: #{_encode_sequence.1} parent=1 // pred_check_branch
      %47 = sbr.rel (0) target = $region29
    $region28: #{_encode_sequence.1} parent=1 // pred_region
      %48 = dma.done [#allocation4], 12288
    $region29: #{_encode_sequence.1} parent=1 // pred_fallthru
      _
    // Predicated region
    $region30: #{_encode_sequence.1} parent=1 // pred_check
      _
    $region31: #{_encode_sequence.1} parent=1 // pred_check_branch
      %50 = sbr.rel (0) target = $region33
    $region32: #{_encode_sequence.1} parent=1 // pred_region
      %51 = dma.done [#allocation7], 12288
    $region33: #{_encode_sequence.1} parent=1 // pred_fallthru
      _
    %v52 = vld [vmem:[%s0] sm:$0x3]
    %v53 = vld [vmem:[#allocation3] sm:$0xff]
    %v54 = vld [vmem:[#allocation3 + $0x8] sm:$0xff]
    %v55 = vld [vmem:[#allocation3 + $0x10] sm:$0xff]
    %v56 = vld [vmem:[#allocation3 + $0x18] sm:$0xff]
    %v57 = vld [vmem:[#allocation3 + $0x20] sm:$0xff]
    %v58 = vld [vmem:[#allocation3 + $0x28] sm:$0xff]
    %v59 = vld [vmem:[#allocation3 + $0x30] sm:$0xff]
    %v60 = vld [vmem:[#allocation3 + $0x38] sm:$0xff]
    %v61 = vld [vmem:[#allocation3 + $0x40] sm:$0xff]
    %v62 = vld [vmem:[#allocation3 + $0x48] sm:$0xff]
    %v63 = vld [vmem:[#allocation3 + $0x50] sm:$0xff]
    %v64 = vld [vmem:[#allocation3 + $0x58] sm:$0xff]
    %v65 = vld [vmem:[#allocation3 + $0x60] sm:$0xff]
    %v66 = vld [vmem:[#allocation3 + $0x68] sm:$0xff]
    %v67 = vld [vmem:[#allocation3 + $0x70] sm:$0xff]
    %v68 = vld [vmem:[#allocation3 + $0x78] sm:$0xff]
    %v69 = vld [vmem:[#allocation3 + $0x80] sm:$0xff]
    %v70 = vld [vmem:[#allocation3 + $0x88] sm:$0xff]
    %v71 = vld [vmem:[#allocation3 + $0x90] sm:$0xff]
    %v72 = vld [vmem:[#allocation3 + $0x98] sm:$0xff]
    %v73 = vld [vmem:[#allocation3 + $0xa0] sm:$0xff]
    %v74 = vld [vmem:[#allocation3 + $0xa8] sm:$0xff]
    %v75 = vld [vmem:[#allocation3 + $0xb0] sm:$0xff]
    %v76 = vld [vmem:[#allocation3 + $0xb8] sm:$0xff]
    %v77 = vld [vmem:[#allocation3 + $0xc0] sm:$0xff]
    %v78 = vld [vmem:[#allocation3 + $0xc8] sm:$0xff]
    %v79 = vld [vmem:[#allocation3 + $0xd0] sm:$0xff]
    %v80 = vld [vmem:[#allocation3 + $0xd8] sm:$0xff]
    %v81 = vld [vmem:[#allocation3 + $0xe0] sm:$0xff]
    %v82 = vld [vmem:[#allocation3 + $0xe8] sm:$0xff]
    %v83 = vld [vmem:[#allocation3 + $0xf0] sm:$0xff]
    %v84 = vld [vmem:[#allocation3 + $0xf8] sm:$0xff]
    %v85 = vld [vmem:[#allocation3 + $0x100] sm:$0xff]
    %v86 = vld [vmem:[#allocation3 + $0x108] sm:$0xff]
    %v87 = vld [vmem:[#allocation3 + $0x110] sm:$0xff]
    %v88 = vld [vmem:[#allocation3 + $0x118] sm:$0xff]
    %v89 = vld [vmem:[#allocation3 + $0x120] sm:$0xff]
    %v90 = vld [vmem:[#allocation3 + $0x128] sm:$0xff]
    %v91 = vld [vmem:[#allocation3 + $0x130] sm:$0xff]
    %v92 = vld [vmem:[#allocation3 + $0x138] sm:$0xff]
    %v93 = vld [vmem:[#allocation3 + $0x140] sm:$0xff]
    %v94 = vld [vmem:[#allocation3 + $0x148] sm:$0xff]
    %v95 = vld [vmem:[#allocation3 + $0x150] sm:$0xff]
    %v96 = vld [vmem:[#allocation3 + $0x158] sm:$0xff]
    %v97 = vld [vmem:[#allocation3 + $0x160] sm:$0xff]
    %v98 = vld [vmem:[#allocation3 + $0x168] sm:$0xff]
    %v99 = vld [vmem:[#allocation3 + $0x170] sm:$0xff]
    %v100 = vld [vmem:[#allocation3 + $0x178] sm:$0xff]
    %v101 = vld [vmem:[#allocation3 + $0x180] sm:$0xff]
    %v102 = vld [vmem:[#allocation3 + $0x188] sm:$0xff]
    %v103 = vld [vmem:[#allocation3 + $0x190] sm:$0xff]
    %v104 = vld [vmem:[#allocation3 + $0x198] sm:$0xff]
    %v105 = vld [vmem:[#allocation3 + $0x1a0] sm:$0xff]
    %v106 = vld [vmem:[#allocation3 + $0x1a8] sm:$0xff]
    %v107 = vld [vmem:[#allocation3 + $0x1b0] sm:$0xff]
    %v108 = vld [vmem:[#allocation3 + $0x1b8] sm:$0xff]
    %v109 = vld [vmem:[#allocation3 + $0x1c0] sm:$0xff]
    %v110 = vld [vmem:[#allocation3 + $0x1c8] sm:$0xff]
    %v111 = vld [vmem:[#allocation3 + $0x1d0] sm:$0xff]
    %v112 = vld [vmem:[#allocation3 + $0x1d8] sm:$0xff]
    %v113 = vld [vmem:[#allocation3 + $0x1e0] sm:$0xff]
    %v114 = vld [vmem:[#allocation3 + $0x1e8] sm:$0xff]
    %v115 = vld [vmem:[#allocation3 + $0x1f0] sm:$0xff]
    %v116 = vld [vmem:[#allocation3 + $0x1f8] sm:$0xff]
    %v117 = vld [vmem:[#allocation3 + $0x200] sm:$0xff]
    %v118 = vld [vmem:[#allocation3 + $0x208] sm:$0xff]
    %v119 = vld [vmem:[#allocation3 + $0x210] sm:$0xff]
    %v120 = vld [vmem:[#allocation3 + $0x218] sm:$0xff]
    %v121 = vld [vmem:[#allocation3 + $0x220] sm:$0xff]
    %v122 = vld [vmem:[#allocation3 + $0x228] sm:$0xff]
    %v123 = vld [vmem:[#allocation3 + $0x230] sm:$0xff]
    %v124 = vld [vmem:[#allocation3 + $0x238] sm:$0xff]
    %v125 = vld [vmem:[#allocation3 + $0x240] sm:$0xff]
    %v126 = vld [vmem:[#allocation3 + $0x248] sm:$0xff]
    %v127 = vld [vmem:[#allocation3 + $0x250] sm:$0xff]
    %v128 = vld [vmem:[#allocation3 + $0x258] sm:$0xff]
    %v129 = vld [vmem:[#allocation3 + $0x260] sm:$0xff]
    %v130 = vld [vmem:[#allocation3 + $0x268] sm:$0xff]
    %v131 = vld [vmem:[#allocation3 + $0x270] sm:$0xff]
    %v132 = vld [vmem:[#allocation3 + $0x278] sm:$0xff]
    %v133 = vld [vmem:[#allocation3 + $0x280] sm:$0xff]
    %v134 = vld [vmem:[#allocation3 + $0x288] sm:$0xff]
    %v135 = vld [vmem:[#allocation3 + $0x290] sm:$0xff]
    %v136 = vld [vmem:[#allocation3 + $0x298] sm:$0xff]
    %v137 = vld [vmem:[#allocation3 + $0x2a0] sm:$0xff]
    %v138 = vld [vmem:[#allocation3 + $0x2a8] sm:$0xff]
    %v139 = vld [vmem:[#allocation3 + $0x2b0] sm:$0xff]
    %v140 = vld [vmem:[#allocation3 + $0x2b8] sm:$0xff]
    %v141 = vld [vmem:[#allocation3 + $0x2c0] sm:$0xff]
    %v142 = vld [vmem:[#allocation3 + $0x2c8] sm:$0xff]
    %v143 = vld [vmem:[#allocation3 + $0x2d0] sm:$0xff]
    %v144 = vld [vmem:[#allocation3 + $0x2d8] sm:$0xff]
    %v145 = vld [vmem:[#allocation3 + $0x2e0] sm:$0xff]
    %v146 = vld [vmem:[#allocation3 + $0x2e8] sm:$0xff]
    %v147 = vld [vmem:[#allocation3 + $0x2f0] sm:$0xff]
    %v148 = vld [vmem:[#allocation3 + $0x2f8] sm:$0xff]
    %v149 = vld [vmem:[%s4] sm:$0x3f]
    %v152 = vunpack.c.l.s4 1966171168
    %v153 = vunpack.c.0.s8 %v152
    %v154 = vlaneseq
    %v155 = vshrl.u32 %v154, 7
    %v156 = vsub.s32 %v153, %v155
    %v157 = vrot.slane %v52, %v156
    %v158 = vcombine.high %v157, %v157
    %v160 = vunpack.c.l.s4 1966171168
    %v161 = vunpack.c.0.s8 %v160
    %v162 = vlaneseq
    %v163 = vshrl.u32 %v162, 7
    %v164 = vsub.s32 %v161, %v163
    %v165 = vrot.slane %v157, %v164
    %v167 = vunpack.c.l.s4 1966171168
    %v168 = vunpack.c.0.s8 %v167
    %v169 = vlaneseq
    %v170 = vshrl.u32 %v169, 7
    %v171 = vsub.s32 %v168, %v170
    %v172 = vrot.slane %v158, %v171
    %v271 = vunpack.c.l.b16 %v53
    %v272 = vunpack.c.h.b16 %v53
    %v273 = vunpack.c.l.b16 %v54
    %v274 = vunpack.c.h.b16 %v54
    %v275 = vunpack.c.l.b16 %v55
    %v276 = vunpack.c.h.b16 %v55
    %v277 = vunpack.c.l.b16 %v56
    %v278 = vunpack.c.h.b16 %v56
    %v279 = vunpack.c.l.b16 %v57
    %v280 = vunpack.c.h.b16 %v57
    %v281 = vunpack.c.l.b16 %v58
    %v282 = vunpack.c.h.b16 %v58
    %v283 = vunpack.c.l.b16 %v59
    %v284 = vunpack.c.h.b16 %v59
    %v285 = vunpack.c.l.b16 %v60
    %v286 = vunpack.c.h.b16 %v60
    %v287 = vunpack.c.l.b16 %v61
    %v288 = vunpack.c.h.b16 %v61
    %v289 = vunpack.c.l.b16 %v62
    %v290 = vunpack.c.h.b16 %v62
    %v291 = vunpack.c.l.b16 %v63
    %v292 = vunpack.c.h.b16 %v63
    %v293 = vunpack.c.l.b16 %v64
    %v294 = vunpack.c.h.b16 %v64
    %v295 = vunpack.c.l.b16 %v65
    %v296 = vunpack.c.h.b16 %v65
    %v297 = vunpack.c.l.b16 %v66
    %v298 = vunpack.c.h.b16 %v66
    %v299 = vunpack.c.l.b16 %v67
    %v300 = vunpack.c.h.b16 %v67
    %v301 = vunpack.c.l.b16 %v68
    %v302 = vunpack.c.h.b16 %v68
    %v303 = vunpack.c.l.b16 %v69
    %v304 = vunpack.c.h.b16 %v69
    %v305 = vunpack.c.l.b16 %v70
    %v306 = vunpack.c.h.b16 %v70
    %v307 = vunpack.c.l.b16 %v71
    %v308 = vunpack.c.h.b16 %v71
    %v309 = vunpack.c.l.b16 %v72
    %v310 = vunpack.c.h.b16 %v72
    %v311 = vunpack.c.l.b16 %v73
    %v312 = vunpack.c.h.b16 %v73
    %v313 = vunpack.c.l.b16 %v74
    %v314 = vunpack.c.h.b16 %v74
    %v315 = vunpack.c.l.b16 %v75
    %v316 = vunpack.c.h.b16 %v75
    %v317 = vunpack.c.l.b16 %v76
    %v318 = vunpack.c.h.b16 %v76
    %v319 = vunpack.c.l.b16 %v77
    %v320 = vunpack.c.h.b16 %v77
    %v321 = vunpack.c.l.b16 %v78
    %v322 = vunpack.c.h.b16 %v78
    %v323 = vunpack.c.l.b16 %v79
    %v324 = vunpack.c.h.b16 %v79
    %v325 = vunpack.c.l.b16 %v80
    %v326 = vunpack.c.h.b16 %v80
    %v327 = vunpack.c.l.b16 %v81
    %v328 = vunpack.c.h.b16 %v81
    %v329 = vunpack.c.l.b16 %v82
    %v330 = vunpack.c.h.b16 %v82
    %v331 = vunpack.c.l.b16 %v83
    %v332 = vunpack.c.h.b16 %v83
    %v333 = vunpack.c.l.b16 %v84
    %v334 = vunpack.c.h.b16 %v84
    %v335 = vunpack.c.l.b16 %v85
    %v336 = vunpack.c.h.b16 %v85
    %v337 = vunpack.c.l.b16 %v86
    %v338 = vunpack.c.h.b16 %v86
    %v339 = vunpack.c.l.b16 %v87
    %v340 = vunpack.c.h.b16 %v87
    %v341 = vunpack.c.l.b16 %v88
    %v342 = vunpack.c.h.b16 %v88
    %v343 = vunpack.c.l.b16 %v89
    %v344 = vunpack.c.h.b16 %v89
    %v345 = vunpack.c.l.b16 %v90
    %v346 = vunpack.c.h.b16 %v90
    %v347 = vunpack.c.l.b16 %v91
    %v348 = vunpack.c.h.b16 %v91
    %v349 = vunpack.c.l.b16 %v92
    %v350 = vunpack.c.h.b16 %v92
    %v351 = vunpack.c.l.b16 %v93
    %v352 = vunpack.c.h.b16 %v93
    %v353 = vunpack.c.l.b16 %v94
    %v354 = vunpack.c.h.b16 %v94
    %v355 = vunpack.c.l.b16 %v95
    %v356 = vunpack.c.h.b16 %v95
    %v357 = vunpack.c.l.b16 %v96
    %v358 = vunpack.c.h.b16 %v96
    %v359 = vunpack.c.l.b16 %v97
    %v360 = vunpack.c.h.b16 %v97
    %v361 = vunpack.c.l.b16 %v98
    %v362 = vunpack.c.h.b16 %v98
    %v363 = vunpack.c.l.b16 %v99
    %v364 = vunpack.c.h.b16 %v99
    %v365 = vunpack.c.l.b16 %v100
    %v366 = vunpack.c.h.b16 %v100
    %v367 = vunpack.c.l.b16 %v101
    %v368 = vunpack.c.h.b16 %v101
    %v369 = vunpack.c.l.b16 %v102
    %v370 = vunpack.c.h.b16 %v102
    %v371 = vunpack.c.l.b16 %v103
    %v372 = vunpack.c.h.b16 %v103
    %v373 = vunpack.c.l.b16 %v104
    %v374 = vunpack.c.h.b16 %v104
    %v375 = vunpack.c.l.b16 %v105
    %v376 = vunpack.c.h.b16 %v105
    %v377 = vunpack.c.l.b16 %v106
    %v378 = vunpack.c.h.b16 %v106
    %v379 = vunpack.c.l.b16 %v107
    %v380 = vunpack.c.h.b16 %v107
    %v381 = vunpack.c.l.b16 %v108
    %v382 = vunpack.c.h.b16 %v108
    %v383 = vunpack.c.l.b16 %v109
    %v384 = vunpack.c.h.b16 %v109
    %v385 = vunpack.c.l.b16 %v110
    %v386 = vunpack.c.h.b16 %v110
    %v387 = vunpack.c.l.b16 %v111
    %v388 = vunpack.c.h.b16 %v111
    %v389 = vunpack.c.l.b16 %v112
    %v390 = vunpack.c.h.b16 %v112
    %v391 = vunpack.c.l.b16 %v113
    %v392 = vunpack.c.h.b16 %v113
    %v393 = vunpack.c.l.b16 %v114
    %v394 = vunpack.c.h.b16 %v114
    %v395 = vunpack.c.l.b16 %v115
    %v396 = vunpack.c.h.b16 %v115
    %v397 = vunpack.c.l.b16 %v116
    %v398 = vunpack.c.h.b16 %v116
    %v399 = vunpack.c.l.b16 %v117
    %v400 = vunpack.c.h.b16 %v117
    %v401 = vunpack.c.l.b16 %v118
    %v402 = vunpack.c.h.b16 %v118
    %v403 = vunpack.c.l.b16 %v119
    %v404 = vunpack.c.h.b16 %v119
    %v405 = vunpack.c.l.b16 %v120
    %v406 = vunpack.c.h.b16 %v120
    %v407 = vunpack.c.l.b16 %v121
    %v408 = vunpack.c.h.b16 %v121
    %v409 = vunpack.c.l.b16 %v122
    %v410 = vunpack.c.h.b16 %v122
    %v411 = vunpack.c.l.b16 %v123
    %v412 = vunpack.c.h.b16 %v123
    %v413 = vunpack.c.l.b16 %v124
    %v414 = vunpack.c.h.b16 %v124
    %v415 = vunpack.c.l.b16 %v125
    %v416 = vunpack.c.h.b16 %v125
    %v417 = vunpack.c.l.b16 %v126
    %v418 = vunpack.c.h.b16 %v126
    %v419 = vunpack.c.l.b16 %v127
    %v420 = vunpack.c.h.b16 %v127
    %v421 = vunpack.c.l.b16 %v128
    %v422 = vunpack.c.h.b16 %v128
    %v423 = vunpack.c.l.b16 %v129
    %v424 = vunpack.c.h.b16 %v129
    %v425 = vunpack.c.l.b16 %v130
    %v426 = vunpack.c.h.b16 %v130
    %v427 = vunpack.c.l.b16 %v131
    %v428 = vunpack.c.h.b16 %v131
    %v429 = vunpack.c.l.b16 %v132
    %v430 = vunpack.c.h.b16 %v132
    %v431 = vunpack.c.l.b16 %v133
    %v432 = vunpack.c.h.b16 %v133
    %v433 = vunpack.c.l.b16 %v134
    %v434 = vunpack.c.h.b16 %v134
    %v435 = vunpack.c.l.b16 %v135
    %v436 = vunpack.c.h.b16 %v135
    %v437 = vunpack.c.l.b16 %v136
    %v438 = vunpack.c.h.b16 %v136
    %v439 = vunpack.c.l.b16 %v137
    %v440 = vunpack.c.h.b16 %v137
    %v441 = vunpack.c.l.b16 %v138
    %v442 = vunpack.c.h.b16 %v138
    %v443 = vunpack.c.l.b16 %v139
    %v444 = vunpack.c.h.b16 %v139
    %v445 = vunpack.c.l.b16 %v140
    %v446 = vunpack.c.h.b16 %v140
    %v447 = vunpack.c.l.b16 %v141
    %v448 = vunpack.c.h.b16 %v141
    %v449 = vunpack.c.l.b16 %v142
    %v450 = vunpack.c.h.b16 %v142
    %v451 = vunpack.c.l.b16 %v143
    %v452 = vunpack.c.h.b16 %v143
    %v453 = vunpack.c.l.b16 %v144
    %v454 = vunpack.c.h.b16 %v144
    %v455 = vunpack.c.l.b16 %v145
    %v456 = vunpack.c.h.b16 %v145
    %v457 = vunpack.c.l.b16 %v146
    %v458 = vunpack.c.h.b16 %v146
    %v459 = vunpack.c.l.b16 %v147
    %v460 = vunpack.c.h.b16 %v147
    %v461 = vunpack.c.l.b16 %v148
    %v462 = vunpack.c.h.b16 %v148
    %v463 = vpack.c.b16 %v277, %v271
    %v464 = vpack.c.b16 %v278, %v272
    %v465 = vpack.c.b16 %v279, %v273
    %v466 = vpack.c.b16 %v280, %v274
    %v467 = vpack.c.b16 %v281, %v275
    %v468 = vpack.c.b16 %v282, %v276
    %v469 = vpack.c.b16 %v289, %v283
    %v470 = vpack.c.b16 %v290, %v284
    %v471 = vpack.c.b16 %v291, %v285
    %v472 = vpack.c.b16 %v292, %v286
    %v473 = vpack.c.b16 %v293, %v287
    %v474 = vpack.c.b16 %v294, %v288
    %v475 = vpack.c.b16 %v301, %v295
    %v476 = vpack.c.b16 %v302, %v296
    %v477 = vpack.c.b16 %v303, %v297
    %v478 = vpack.c.b16 %v304, %v298
    %v479 = vpack.c.b16 %v305, %v299
    %v480 = vpack.c.b16 %v306, %v300
    %v481 = vpack.c.b16 %v313, %v307
    %v482 = vpack.c.b16 %v314, %v308
    %v483 = vpack.c.b16 %v315, %v309
    %v484 = vpack.c.b16 %v316, %v310
    %v485 = vpack.c.b16 %v317, %v311
    %v486 = vpack.c.b16 %v318, %v312
    %v487 = vpack.c.b16 %v325, %v319
    %v488 = vpack.c.b16 %v326, %v320
    %v489 = vpack.c.b16 %v327, %v321
    %v490 = vpack.c.b16 %v328, %v322
    %v491 = vpack.c.b16 %v329, %v323
    %v492 = vpack.c.b16 %v330, %v324
    %v493 = vpack.c.b16 %v337, %v331
    %v494 = vpack.c.b16 %v338, %v332
    %v495 = vpack.c.b16 %v339, %v333
    %v496 = vpack.c.b16 %v340, %v334
    %v497 = vpack.c.b16 %v341, %v335
    %v498 = vpack.c.b16 %v342, %v336
    %v499 = vpack.c.b16 %v349, %v343
    %v500 = vpack.c.b16 %v350, %v344
    %v501 = vpack.c.b16 %v351, %v345
    %v502 = vpack.c.b16 %v352, %v346
    %v503 = vpack.c.b16 %v353, %v347
    %v504 = vpack.c.b16 %v354, %v348
    %v505 = vpack.c.b16 %v361, %v355
    %v506 = vpack.c.b16 %v362, %v356
    %v507 = vpack.c.b16 %v363, %v357
    %v508 = vpack.c.b16 %v364, %v358
    %v509 = vpack.c.b16 %v365, %v359
    %v510 = vpack.c.b16 %v366, %v360
    %v511 = vpack.c.b16 %v373, %v367
    %v512 = vpack.c.b16 %v374, %v368
    %v513 = vpack.c.b16 %v375, %v369
    %v514 = vpack.c.b16 %v376, %v370
    %v515 = vpack.c.b16 %v377, %v371
    %v516 = vpack.c.b16 %v378, %v372
    %v517 = vpack.c.b16 %v385, %v379
    %v518 = vpack.c.b16 %v386, %v380
    %v519 = vpack.c.b16 %v387, %v381
    %v520 = vpack.c.b16 %v388, %v382
    %v521 = vpack.c.b16 %v389, %v383
    %v522 = vpack.c.b16 %v390, %v384
    %v523 = vpack.c.b16 %v397, %v391
    %v524 = vpack.c.b16 %v398, %v392
    %v525 = vpack.c.b16 %v399, %v393
    %v526 = vpack.c.b16 %v400, %v394
    %v527 = vpack.c.b16 %v401, %v395
    %v528 = vpack.c.b16 %v402, %v396
    %v529 = vpack.c.b16 %v409, %v403
    %v530 = vpack.c.b16 %v410, %v404
    %v531 = vpack.c.b16 %v411, %v405
    %v532 = vpack.c.b16 %v412, %v406
    %v533 = vpack.c.b16 %v413, %v407
    %v534 = vpack.c.b16 %v414, %v408
    %v535 = vpack.c.b16 %v421, %v415
    %v536 = vpack.c.b16 %v422, %v416
    %v537 = vpack.c.b16 %v423, %v417
    %v538 = vpack.c.b16 %v424, %v418
    %v539 = vpack.c.b16 %v425, %v419
    %v540 = vpack.c.b16 %v426, %v420
    %v541 = vpack.c.b16 %v433, %v427
    %v542 = vpack.c.b16 %v434, %v428
    %v543 = vpack.c.b16 %v435, %v429
    %v544 = vpack.c.b16 %v436, %v430
    %v545 = vpack.c.b16 %v437, %v431
    %v546 = vpack.c.b16 %v438, %v432
    %v547 = vpack.c.b16 %v445, %v439
    %v548 = vpack.c.b16 %v446, %v440
    %v549 = vpack.c.b16 %v447, %v441
    %v550 = vpack.c.b16 %v448, %v442
    %v551 = vpack.c.b16 %v449, %v443
    %v552 = vpack.c.b16 %v450, %v444
    %v553 = vpack.c.b16 %v457, %v451
    %v554 = vpack.c.b16 %v458, %v452
    %v555 = vpack.c.b16 %v459, %v453
    %v556 = vpack.c.b16 %v460, %v454
    %v557 = vpack.c.b16 %v461, %v455
    %v558 = vpack.c.b16 %v462, %v456
    %v656 = vlaneseq
    %v657 = vshrl.u32 %v656, 7
    %v658 = vsub.s32 0, %v657
    %v659 = vrot.slane %v149, %v658
    %v660 = vlaneseq
    %v661 = vshrl.u32 %v660, 7
    %v662 = vsub.s32 1, %v661
    %v663 = vrot.slane %v149, %v662
    %v664 = vlaneseq
    %v665 = vshrl.u32 %v664, 7
    %v666 = vsub.s32 2, %v665
    %v667 = vrot.slane %v149, %v666
    %v668 = vlaneseq
    %v669 = vshrl.u32 %v668, 7
    %v670 = vsub.s32 3, %v669
    %v671 = vrot.slane %v149, %v670
    %v672 = vlaneseq
    %v673 = vshrl.u32 %v672, 7
    %v674 = vsub.s32 4, %v673
    %v675 = vrot.slane %v149, %v674
    %v676 = vlaneseq
    %v677 = vshrl.u32 %v676, 7
    %v678 = vsub.s32 5, %v677
    %v679 = vrot.slane %v149, %v678
    %686 = vmatprep.subr.bf16.mxu0 %v506
    %687 = vmatpush1.bf16.msra.mxu0 %v505
    %688 = vmatprep.subr.bf16.mxu0 %v500
    %689 = vmatpush1.bf16.msra.mxu0 %v499
    %690 = vmatprep.subr.bf16.mxu0 %v494
    %691 = vmatpush1.bf16.msra.mxu0 %v493
    %692 = vmatprep.subr.bf16.mxu0 %v488
    %693 = vmatpush1.bf16.msra.mxu0 %v487
    %694 = vmatprep.subr.bf16.mxu0 %v482
    %695 = vmatpush1.bf16.msra.mxu0 %v481
    %696 = vmatprep.subr.bf16.mxu0 %v476
    %697 = vmatpush1.bf16.msra.mxu0 %v475
    %698 = vmatprep.subr.bf16.mxu0 %v470
    %699 = vmatpush1.bf16.msra.mxu0 %v469
    %700 = vmatprep.subr.bf16.mxu0 %v464
    %701 = vmatpush1.bf16.msra.mxu0 %v463
    %702 = vmatprep.subr.bf16.mxu0 %v554
    %703 = vmatpush2.bf16.msra.mxu0 %v553
    %704 = vmatprep.subr.bf16.mxu0 %v548
    %705 = vmatpush2.bf16.msra.mxu0 %v547
    %706 = vmatprep.subr.bf16.mxu0 %v542
    %707 = vmatpush2.bf16.msra.mxu0 %v541
    %708 = vmatprep.subr.bf16.mxu0 %v536
    %709 = vmatpush2.bf16.msra.mxu0 %v535
    %710 = vmatprep.subr.bf16.mxu0 %v530
    %711 = vmatpush2.bf16.msra.mxu0 %v529
    %712 = vmatprep.subr.bf16.mxu0 %v524
    %713 = vmatpush2.bf16.msra.mxu0 %v523
    %714 = vmatprep.subr.bf16.mxu0 %v518
    %715 = vmatpush2.bf16.msra.mxu0 %v517
    %716 = vmatprep.subr.bf16.mxu0 %v512
    %717 = vmatpush2.bf16.msra.mxu0 %v511
    %718 = vmatprep.mubr.bf16.mxu0 %v172
    %719 = vmatmul.mubr.bf16.gmra.mxu0 %v165
    %v720 = vpop.f32.mrf.mxu0
    %v721 = vadd.f32 %v659, %v720
    %v722 = vpop.f32.mrf.mxu0
    %v723 = vadd.f32 %v663, %v722
    %v724 = vpop.f32.mrf.mxu0
    %v725 = vpop.f32.mrf.mxu0
    %726 = vdwg.mxu0
    %727 = vmatprep.subr.bf16.mxu0 %v508
    %728 = vmatpush1.bf16.msra.mxu0 %v507
    %729 = vmatprep.subr.bf16.mxu0 %v502
    %730 = vmatpush1.bf16.msra.mxu0 %v501
    %731 = vmatprep.subr.bf16.mxu0 %v496
    %732 = vmatpush1.bf16.msra.mxu0 %v495
    %733 = vmatprep.subr.bf16.mxu0 %v490
    %734 = vmatpush1.bf16.msra.mxu0 %v489
    %735 = vmatprep.subr.bf16.mxu0 %v484
    %736 = vmatpush1.bf16.msra.mxu0 %v483
    %737 = vmatprep.subr.bf16.mxu0 %v478
    %738 = vmatpush1.bf16.msra.mxu0 %v477
    %739 = vmatprep.subr.bf16.mxu0 %v472
    %740 = vmatpush1.bf16.msra.mxu0 %v471
    %741 = vmatprep.subr.bf16.mxu0 %v466
    %742 = vmatpush1.bf16.msra.mxu0 %v465
    %743 = vmatprep.subr.bf16.mxu0 %v556
    %744 = vmatpush2.bf16.msra.mxu0 %v555
    %745 = vmatprep.subr.bf16.mxu0 %v550
    %746 = vmatpush2.bf16.msra.mxu0 %v549
    %747 = vmatprep.subr.bf16.mxu0 %v544
    %748 = vmatpush2.bf16.msra.mxu0 %v543
    %749 = vmatprep.subr.bf16.mxu0 %v538
    %750 = vmatpush2.bf16.msra.mxu0 %v537
    %751 = vmatprep.subr.bf16.mxu0 %v532
    %752 = vmatpush2.bf16.msra.mxu0 %v531
    %753 = vmatprep.subr.bf16.mxu0 %v526
    %754 = vmatpush2.bf16.msra.mxu0 %v525
    %755 = vmatprep.subr.bf16.mxu0 %v520
    %756 = vmatpush2.bf16.msra.mxu0 %v519
    %757 = vmatprep.subr.bf16.mxu0 %v514
    %758 = vmatpush2.bf16.msra.mxu0 %v513
    %759 = vmatprep.mubr.bf16.mxu0 %v172
    %760 = vmatmul.mubr.bf16.gmra.mxu0 %v165
    %v761 = vpop.f32.mrf.mxu0
    %v762 = vadd.f32 %v667, %v761
    %v763 = vpop.f32.mrf.mxu0
    %v764 = vadd.f32 %v671, %v763
    %v765 = vpop.f32.mrf.mxu0
    %v766 = vpop.f32.mrf.mxu0
    %767 = vdwg.mxu0
    %768 = vmatprep.subr.bf16.mxu0 %v510
    %769 = vmatpush1.bf16.msra.mxu0 %v509
    %770 = vmatprep.subr.bf16.mxu0 %v504
    %771 = vmatpush1.bf16.msra.mxu0 %v503
    %772 = vmatprep.subr.bf16.mxu0 %v498
    %773 = vmatpush1.bf16.msra.mxu0 %v497
    %774 = vmatprep.subr.bf16.mxu0 %v492
    %775 = vmatpush1.bf16.msra.mxu0 %v491
    %776 = vmatprep.subr.bf16.mxu0 %v486
    %777 = vmatpush1.bf16.msra.mxu0 %v485
    %778 = vmatprep.subr.bf16.mxu0 %v480
    %779 = vmatpush1.bf16.msra.mxu0 %v479
    %780 = vmatprep.subr.bf16.mxu0 %v474
    %781 = vmatpush1.bf16.msra.mxu0 %v473
    %782 = vmatprep.subr.bf16.mxu0 %v468
    %783 = vmatpush1.bf16.msra.mxu0 %v467
    %784 = vmatprep.subr.bf16.mxu0 %v558
    %785 = vmatpush2.bf16.msra.mxu0 %v557
    %786 = vmatprep.subr.bf16.mxu0 %v552
    %787 = vmatpush2.bf16.msra.mxu0 %v551
    %788 = vmatprep.subr.bf16.mxu0 %v546
    %789 = vmatpush2.bf16.msra.mxu0 %v545
    %790 = vmatprep.subr.bf16.mxu0 %v540
    %791 = vmatpush2.bf16.msra.mxu0 %v539
    %792 = vmatprep.subr.bf16.mxu0 %v534
    %793 = vmatpush2.bf16.msra.mxu0 %v533
    %794 = vmatprep.subr.bf16.mxu0 %v528
    %795 = vmatpush2.bf16.msra.mxu0 %v527
    %796 = vmatprep.subr.bf16.mxu0 %v522
    %797 = vmatpush2.bf16.msra.mxu0 %v521
    %798 = vmatprep.subr.bf16.mxu0 %v516
    %799 = vmatpush2.bf16.msra.mxu0 %v515
    %800 = vmatprep.mubr.bf16.mxu0 %v172
    %801 = vmatmul.mubr.bf16.gmra.mxu0 %v165
    %v802 = vpop.f32.mrf.mxu0
    %v803 = vadd.f32 %v675, %v802
    %v804 = vpop.f32.mrf.mxu0
    %v805 = vadd.f32 %v679, %v804
    %v806 = vpop.f32.mrf.mxu0
    %v807 = vpop.f32.mrf.mxu0
    %808 = vdwg.mxu0
    %v815 = vcombine.low %v721, %v723
    %v816 = vcombine.low %v762, %v764
    %v817 = vcombine.low %v803, %v805
    %v819 = vunpack.c.l.s4 1966171168
    %v820 = vunpack.c.0.s8 %v819
    %v821 = vlaneseq
    %v822 = vshrl.u32 %v821, 7
    %v823 = vsub.s32 %v820, %v822
    %v824 = vrot.slane %v815, %v823
    %v826 = vunpack.c.l.s4 1966171168
    %v827 = vunpack.c.0.s8 %v826
    %v828 = vlaneseq
    %v829 = vshrl.u32 %v828, 7
    %v830 = vsub.s32 %v827, %v829
    %v831 = vrot.slane %v816, %v830
    %v833 = vunpack.c.l.s4 1966171168
    %v834 = vunpack.c.0.s8 %v833
    %v835 = vlaneseq
    %v836 = vshrl.u32 %v835, 7
    %v837 = vsub.s32 %v834, %v836
    %v838 = vrot.slane %v817, %v837
    %v839 = vcombine.low %v824, %v831
    %v841 = vunpack.c.l.s4 1966171168
    %v842 = vunpack.c.0.s8 %v841
    %v843 = vlaneseq
    %v844 = vshrl.u32 %v843, 7
    %v845 = vsub.s32 %v842, %v844
    %v846 = vrot.slane %v839, %v845
    %v848 = vunpack.c.l.s4 1966171168
    %v849 = vunpack.c.0.s8 %v848
    %v850 = vlaneseq
    %v851 = vshrl.u32 %v850, 7
    %v852 = vsub.s32 %v849, %v851
    %v853 = vrot.slane %v838, %v852
    %v854 = vcombine.low %v846, %v853
    %v856 = vlaneseq
    %vm857 = vcmp.ge.s32.totalorder %v856, 0
    %vm858 = vcmp.lt.s32.totalorder %v856, 768
    %vm859 = vmand %vm857, %vm858
    %860 = vst.msk [vmem:[#allocation2] sm:$0x3f] %vm859, %v854
    %v861 = vld [vmem:[%s5] sm:$0x3]
    %v862 = vld [vmem:[%s1] sm:$0x3]
    %v863 = vld [vmem:[#allocation2] sm:$0x3f]
    %v865 = vlaneseq
    %v866 = vshrl.u32 %v865, 7
    %v867 = vsub.s32 0, %v866
    %v868 = vrot.slane %v862, %v867
    %v869 = vlaneseq
    %v870 = vshrl.u32 %v869, 7
    %v871 = vsub.s32 1, %v870
    %v872 = vrot.slane %v862, %v871
    %v875 = vpack.c.bf16 %v868, %v868
    %v876 = vpack.c.bf16 %v872, %v872
    %v877 = vld [vmem:[#allocation6] sm:$0xff]
    %v878 = vld [vmem:[#allocation6 + $0x8] sm:$0xff]
    %v879 = vld [vmem:[#allocation6 + $0x10] sm:$0xff]
    %v880 = vld [vmem:[#allocation6 + $0x18] sm:$0xff]
    %v881 = vld [vmem:[#allocation6 + $0x20] sm:$0xff]
    %v882 = vld [vmem:[#allocation6 + $0x28] sm:$0xff]
    %v883 = vld [vmem:[#allocation6 + $0x30] sm:$0xff]
    %v884 = vld [vmem:[#allocation6 + $0x38] sm:$0xff]
    %v885 = vld [vmem:[#allocation6 + $0x40] sm:$0xff]
    %v886 = vld [vmem:[#allocation6 + $0x48] sm:$0xff]
    %v887 = vld [vmem:[#allocation6 + $0x50] sm:$0xff]
    %v888 = vld [vmem:[#allocation6 + $0x58] sm:$0xff]
    %v889 = vld [vmem:[#allocation6 + $0x60] sm:$0xff]
    %v890 = vld [vmem:[#allocation6 + $0x68] sm:$0xff]
    %v891 = vld [vmem:[#allocation6 + $0x70] sm:$0xff]
    %v892 = vld [vmem:[#allocation6 + $0x78] sm:$0xff]
    %v893 = vld [vmem:[#allocation6 + $0x80] sm:$0xff]
    %v894 = vld [vmem:[#allocation6 + $0x88] sm:$0xff]
    %v895 = vld [vmem:[#allocation6 + $0x90] sm:$0xff]
    %v896 = vld [vmem:[#allocation6 + $0x98] sm:$0xff]
    %v897 = vld [vmem:[#allocation6 + $0xa0] sm:$0xff]
    %v898 = vld [vmem:[#allocation6 + $0xa8] sm:$0xff]
    %v899 = vld [vmem:[#allocation6 + $0xb0] sm:$0xff]
    %v900 = vld [vmem:[#allocation6 + $0xb8] sm:$0xff]
    %v901 = vld [vmem:[#allocation6 + $0xc0] sm:$0xff]
    %v902 = vld [vmem:[#allocation6 + $0xc8] sm:$0xff]
    %v903 = vld [vmem:[#allocation6 + $0xd0] sm:$0xff]
    %v904 = vld [vmem:[#allocation6 + $0xd8] sm:$0xff]
    %v905 = vld [vmem:[#allocation6 + $0xe0] sm:$0xff]
    %v906 = vld [vmem:[#allocation6 + $0xe8] sm:$0xff]
    %v907 = vld [vmem:[#allocation6 + $0xf0] sm:$0xff]
    %v908 = vld [vmem:[#allocation6 + $0xf8] sm:$0xff]
    %v909 = vld [vmem:[#allocation6 + $0x100] sm:$0xff]
    %v910 = vld [vmem:[#allocation6 + $0x108] sm:$0xff]
    %v911 = vld [vmem:[#allocation6 + $0x110] sm:$0xff]
    %v912 = vld [vmem:[#allocation6 + $0x118] sm:$0xff]
    %v913 = vld [vmem:[#allocation6 + $0x120] sm:$0xff]
    %v914 = vld [vmem:[#allocation6 + $0x128] sm:$0xff]
    %v915 = vld [vmem:[#allocation6 + $0x130] sm:$0xff]
    %v916 = vld [vmem:[#allocation6 + $0x138] sm:$0xff]
    %v917 = vld [vmem:[#allocation6 + $0x140] sm:$0xff]
    %v918 = vld [vmem:[#allocation6 + $0x148] sm:$0xff]
    %v919 = vld [vmem:[#allocation6 + $0x150] sm:$0xff]
    %v920 = vld [vmem:[#allocation6 + $0x158] sm:$0xff]
    %v921 = vld [vmem:[#allocation6 + $0x160] sm:$0xff]
    %v922 = vld [vmem:[#allocation6 + $0x168] sm:$0xff]
    %v923 = vld [vmem:[#allocation6 + $0x170] sm:$0xff]
    %v924 = vld [vmem:[#allocation6 + $0x178] sm:$0xff]
    %v925 = vld [vmem:[#allocation6 + $0x180] sm:$0xff]
    %v926 = vld [vmem:[#allocation6 + $0x188] sm:$0xff]
    %v927 = vld [vmem:[#allocation6 + $0x190] sm:$0xff]
    %v928 = vld [vmem:[#allocation6 + $0x198] sm:$0xff]
    %v929 = vld [vmem:[#allocation6 + $0x1a0] sm:$0xff]
    %v930 = vld [vmem:[#allocation6 + $0x1a8] sm:$0xff]
    %v931 = vld [vmem:[#allocation6 + $0x1b0] sm:$0xff]
    %v932 = vld [vmem:[#allocation6 + $0x1b8] sm:$0xff]
    %v933 = vld [vmem:[#allocation6 + $0x1c0] sm:$0xff]
    %v934 = vld [vmem:[#allocation6 + $0x1c8] sm:$0xff]
    %v935 = vld [vmem:[#allocation6 + $0x1d0] sm:$0xff]
    %v936 = vld [vmem:[#allocation6 + $0x1d8] sm:$0xff]
    %v937 = vld [vmem:[#allocation6 + $0x1e0] sm:$0xff]
    %v938 = vld [vmem:[#allocation6 + $0x1e8] sm:$0xff]
    %v939 = vld [vmem:[#allocation6 + $0x1f0] sm:$0xff]
    %v940 = vld [vmem:[#allocation6 + $0x1f8] sm:$0xff]
    %v941 = vld [vmem:[#allocation6 + $0x200] sm:$0xff]
    %v942 = vld [vmem:[#allocation6 + $0x208] sm:$0xff]
    %v943 = vld [vmem:[#allocation6 + $0x210] sm:$0xff]
    %v944 = vld [vmem:[#allocation6 + $0x218] sm:$0xff]
    %v945 = vld [vmem:[#allocation6 + $0x220] sm:$0xff]
    %v946 = vld [vmem:[#allocation6 + $0x228] sm:$0xff]
    %v947 = vld [vmem:[#allocation6 + $0x230] sm:$0xff]
    %v948 = vld [vmem:[#allocation6 + $0x238] sm:$0xff]
    %v949 = vld [vmem:[#allocation6 + $0x240] sm:$0xff]
    %v950 = vld [vmem:[#allocation6 + $0x248] sm:$0xff]
    %v951 = vld [vmem:[#allocation6 + $0x250] sm:$0xff]
    %v952 = vld [vmem:[#allocation6 + $0x258] sm:$0xff]
    %v953 = vld [vmem:[#allocation6 + $0x260] sm:$0xff]
    %v954 = vld [vmem:[#allocation6 + $0x268] sm:$0xff]
    %v955 = vld [vmem:[#allocation6 + $0x270] sm:$0xff]
    %v956 = vld [vmem:[#allocation6 + $0x278] sm:$0xff]
    %v957 = vld [vmem:[#allocation6 + $0x280] sm:$0xff]
    %v958 = vld [vmem:[#allocation6 + $0x288] sm:$0xff]
    %v959 = vld [vmem:[#allocation6 + $0x290] sm:$0xff]
    %v960 = vld [vmem:[#allocation6 + $0x298] sm:$0xff]
    %v961 = vld [vmem:[#allocation6 + $0x2a0] sm:$0xff]
    %v962 = vld [vmem:[#allocation6 + $0x2a8] sm:$0xff]
    %v963 = vld [vmem:[#allocation6 + $0x2b0] sm:$0xff]
    %v964 = vld [vmem:[#allocation6 + $0x2b8] sm:$0xff]
    %v965 = vld [vmem:[#allocation6 + $0x2c0] sm:$0xff]
    %v966 = vld [vmem:[#allocation6 + $0x2c8] sm:$0xff]
    %v967 = vld [vmem:[#allocation6 + $0x2d0] sm:$0xff]
    %v968 = vld [vmem:[#allocation6 + $0x2d8] sm:$0xff]
    %v969 = vld [vmem:[#allocation6 + $0x2e0] sm:$0xff]
    %v970 = vld [vmem:[#allocation6 + $0x2e8] sm:$0xff]
    %v971 = vld [vmem:[#allocation6 + $0x2f0] sm:$0xff]
    %v972 = vld [vmem:[#allocation6 + $0x2f8] sm:$0xff]
    %v1069 = vunpack.c.l.b16 %v877
    %v1070 = vunpack.c.h.b16 %v877
    %v1071 = vunpack.c.l.b16 %v878
    %v1072 = vunpack.c.h.b16 %v878
    %v1073 = vunpack.c.l.b16 %v879
    %v1074 = vunpack.c.h.b16 %v879
    %v1075 = vunpack.c.l.b16 %v880
    %v1076 = vunpack.c.h.b16 %v880
    %v1077 = vunpack.c.l.b16 %v881
    %v1078 = vunpack.c.h.b16 %v881
    %v1079 = vunpack.c.l.b16 %v882
    %v1080 = vunpack.c.h.b16 %v882
    %v1081 = vunpack.c.l.b16 %v883
    %v1082 = vunpack.c.h.b16 %v883
    %v1083 = vunpack.c.l.b16 %v884
    %v1084 = vunpack.c.h.b16 %v884
    %v1085 = vunpack.c.l.b16 %v885
    %v1086 = vunpack.c.h.b16 %v885
    %v1087 = vunpack.c.l.b16 %v886
    %v1088 = vunpack.c.h.b16 %v886
    %v1089 = vunpack.c.l.b16 %v887
    %v1090 = vunpack.c.h.b16 %v887
    %v1091 = vunpack.c.l.b16 %v888
    %v1092 = vunpack.c.h.b16 %v888
    %v1093 = vunpack.c.l.b16 %v889
    %v1094 = vunpack.c.h.b16 %v889
    %v1095 = vunpack.c.l.b16 %v890
    %v1096 = vunpack.c.h.b16 %v890
    %v1097 = vunpack.c.l.b16 %v891
    %v1098 = vunpack.c.h.b16 %v891
    %v1099 = vunpack.c.l.b16 %v892
    %v1100 = vunpack.c.h.b16 %v892
    %v1101 = vunpack.c.l.b16 %v893
    %v1102 = vunpack.c.h.b16 %v893
    %v1103 = vunpack.c.l.b16 %v894
    %v1104 = vunpack.c.h.b16 %v894
    %v1105 = vunpack.c.l.b16 %v895
    %v1106 = vunpack.c.h.b16 %v895
    %v1107 = vunpack.c.l.b16 %v896
    %v1108 = vunpack.c.h.b16 %v896
    %v1109 = vunpack.c.l.b16 %v897
    %v1110 = vunpack.c.h.b16 %v897
    %v1111 = vunpack.c.l.b16 %v898
    %v1112 = vunpack.c.h.b16 %v898
    %v1113 = vunpack.c.l.b16 %v899
    %v1114 = vunpack.c.h.b16 %v899
    %v1115 = vunpack.c.l.b16 %v900
    %v1116 = vunpack.c.h.b16 %v900
    %v1117 = vunpack.c.l.b16 %v901
    %v1118 = vunpack.c.h.b16 %v901
    %v1119 = vunpack.c.l.b16 %v902
    %v1120 = vunpack.c.h.b16 %v902
    %v1121 = vunpack.c.l.b16 %v903
    %v1122 = vunpack.c.h.b16 %v903
    %v1123 = vunpack.c.l.b16 %v904
    %v1124 = vunpack.c.h.b16 %v904
    %v1125 = vunpack.c.l.b16 %v905
    %v1126 = vunpack.c.h.b16 %v905
    %v1127 = vunpack.c.l.b16 %v906
    %v1128 = vunpack.c.h.b16 %v906
    %v1129 = vunpack.c.l.b16 %v907
    %v1130 = vunpack.c.h.b16 %v907
    %v1131 = vunpack.c.l.b16 %v908
    %v1132 = vunpack.c.h.b16 %v908
    %v1133 = vunpack.c.l.b16 %v909
    %v1134 = vunpack.c.h.b16 %v909
    %v1135 = vunpack.c.l.b16 %v910
    %v1136 = vunpack.c.h.b16 %v910
    %v1137 = vunpack.c.l.b16 %v911
    %v1138 = vunpack.c.h.b16 %v911
    %v1139 = vunpack.c.l.b16 %v912
    %v1140 = vunpack.c.h.b16 %v912
    %v1141 = vunpack.c.l.b16 %v913
    %v1142 = vunpack.c.h.b16 %v913
    %v1143 = vunpack.c.l.b16 %v914
    %v1144 = vunpack.c.h.b16 %v914
    %v1145 = vunpack.c.l.b16 %v915
    %v1146 = vunpack.c.h.b16 %v915
    %v1147 = vunpack.c.l.b16 %v916
    %v1148 = vunpack.c.h.b16 %v916
    %v1149 = vunpack.c.l.b16 %v917
    %v1150 = vunpack.c.h.b16 %v917
    %v1151 = vunpack.c.l.b16 %v918
    %v1152 = vunpack.c.h.b16 %v918
    %v1153 = vunpack.c.l.b16 %v919
    %v1154 = vunpack.c.h.b16 %v919
    %v1155 = vunpack.c.l.b16 %v920
    %v1156 = vunpack.c.h.b16 %v920
    %v1157 = vunpack.c.l.b16 %v921
    %v1158 = vunpack.c.h.b16 %v921
    %v1159 = vunpack.c.l.b16 %v922
    %v1160 = vunpack.c.h.b16 %v922
    %v1161 = vunpack.c.l.b16 %v923
    %v1162 = vunpack.c.h.b16 %v923
    %v1163 = vunpack.c.l.b16 %v924
    %v1164 = vunpack.c.h.b16 %v924
    %v1165 = vunpack.c.l.b16 %v925
    %v1166 = vunpack.c.h.b16 %v925
    %v1167 = vunpack.c.l.b16 %v926
    %v1168 = vunpack.c.h.b16 %v926
    %v1169 = vunpack.c.l.b16 %v927
    %v1170 = vunpack.c.h.b16 %v927
    %v1171 = vunpack.c.l.b16 %v928
    %v1172 = vunpack.c.h.b16 %v928
    %v1173 = vunpack.c.l.b16 %v929
    %v1174 = vunpack.c.h.b16 %v929
    %v1175 = vunpack.c.l.b16 %v930
    %v1176 = vunpack.c.h.b16 %v930
    %v1177 = vunpack.c.l.b16 %v931
    %v1178 = vunpack.c.h.b16 %v931
    %v1179 = vunpack.c.l.b16 %v932
    %v1180 = vunpack.c.h.b16 %v932
    %v1181 = vunpack.c.l.b16 %v933
    %v1182 = vunpack.c.h.b16 %v933
    %v1183 = vunpack.c.l.b16 %v934
    %v1184 = vunpack.c.h.b16 %v934
    %v1185 = vunpack.c.l.b16 %v935
    %v1186 = vunpack.c.h.b16 %v935
    %v1187 = vunpack.c.l.b16 %v936
    %v1188 = vunpack.c.h.b16 %v936
    %v1189 = vunpack.c.l.b16 %v937
    %v1190 = vunpack.c.h.b16 %v937
    %v1191 = vunpack.c.l.b16 %v938
    %v1192 = vunpack.c.h.b16 %v938
    %v1193 = vunpack.c.l.b16 %v939
    %v1194 = vunpack.c.h.b16 %v939
    %v1195 = vunpack.c.l.b16 %v940
    %v1196 = vunpack.c.h.b16 %v940
    %v1197 = vunpack.c.l.b16 %v941
    %v1198 = vunpack.c.h.b16 %v941
    %v1199 = vunpack.c.l.b16 %v942
    %v1200 = vunpack.c.h.b16 %v942
    %v1201 = vunpack.c.l.b16 %v943
    %v1202 = vunpack.c.h.b16 %v943
    %v1203 = vunpack.c.l.b16 %v944
    %v1204 = vunpack.c.h.b16 %v944
    %v1205 = vunpack.c.l.b16 %v945
    %v1206 = vunpack.c.h.b16 %v945
    %v1207 = vunpack.c.l.b16 %v946
    %v1208 = vunpack.c.h.b16 %v946
    %v1209 = vunpack.c.l.b16 %v947
    %v1210 = vunpack.c.h.b16 %v947
    %v1211 = vunpack.c.l.b16 %v948
    %v1212 = vunpack.c.h.b16 %v948
    %v1213 = vunpack.c.l.b16 %v949
    %v1214 = vunpack.c.h.b16 %v949
    %v1215 = vunpack.c.l.b16 %v950
    %v1216 = vunpack.c.h.b16 %v950
    %v1217 = vunpack.c.l.b16 %v951
    %v1218 = vunpack.c.h.b16 %v951
    %v1219 = vunpack.c.l.b16 %v952
    %v1220 = vunpack.c.h.b16 %v952
    %v1221 = vunpack.c.l.b16 %v953
    %v1222 = vunpack.c.h.b16 %v953
    %v1223 = vunpack.c.l.b16 %v954
    %v1224 = vunpack.c.h.b16 %v954
    %v1225 = vunpack.c.l.b16 %v955
    %v1226 = vunpack.c.h.b16 %v955
    %v1227 = vunpack.c.l.b16 %v956
    %v1228 = vunpack.c.h.b16 %v956
    %v1229 = vunpack.c.l.b16 %v957
    %v1230 = vunpack.c.h.b16 %v957
    %v1231 = vunpack.c.l.b16 %v958
    %v1232 = vunpack.c.h.b16 %v958
    %v1233 = vunpack.c.l.b16 %v959
    %v1234 = vunpack.c.h.b16 %v959
    %v1235 = vunpack.c.l.b16 %v960
    %v1236 = vunpack.c.h.b16 %v960
    %v1237 = vunpack.c.l.b16 %v961
    %v1238 = vunpack.c.h.b16 %v961
    %v1239 = vunpack.c.l.b16 %v962
    %v1240 = vunpack.c.h.b16 %v962
    %v1241 = vunpack.c.l.b16 %v963
    %v1242 = vunpack.c.h.b16 %v963
    %v1243 = vunpack.c.l.b16 %v964
    %v1244 = vunpack.c.h.b16 %v964
    %v1245 = vunpack.c.l.b16 %v965
    %v1246 = vunpack.c.h.b16 %v965
    %v1247 = vunpack.c.l.b16 %v966
    %v1248 = vunpack.c.h.b16 %v966
    %v1249 = vunpack.c.l.b16 %v967
    %v1250 = vunpack.c.h.b16 %v967
    %v1251 = vunpack.c.l.b16 %v968
    %v1252 = vunpack.c.h.b16 %v968
    %v1253 = vunpack.c.l.b16 %v969
    %v1254 = vunpack.c.h.b16 %v969
    %v1255 = vunpack.c.l.b16 %v970
    %v1256 = vunpack.c.h.b16 %v970
    %v1257 = vunpack.c.l.b16 %v971
    %v1258 = vunpack.c.h.b16 %v971
    %v1259 = vunpack.c.l.b16 %v972
    %v1260 = vunpack.c.h.b16 %v972
    %v1261 = vpack.c.b16 %v1075, %v1069
    %v1262 = vpack.c.b16 %v1076, %v1070
    %v1263 = vpack.c.b16 %v1077, %v1071
    %v1264 = vpack.c.b16 %v1078, %v1072
    %v1265 = vpack.c.b16 %v1079, %v1073
    %v1266 = vpack.c.b16 %v1080, %v1074
    %v1267 = vpack.c.b16 %v1087, %v1081
    %v1268 = vpack.c.b16 %v1088, %v1082
    %v1269 = vpack.c.b16 %v1089, %v1083
    %v1270 = vpack.c.b16 %v1090, %v1084
    %v1271 = vpack.c.b16 %v1091, %v1085
    %v1272 = vpack.c.b16 %v1092, %v1086
    %v1273 = vpack.c.b16 %v1099, %v1093
    %v1274 = vpack.c.b16 %v1100, %v1094
    %v1275 = vpack.c.b16 %v1101, %v1095
    %v1276 = vpack.c.b16 %v1102, %v1096
    %v1277 = vpack.c.b16 %v1103, %v1097
    %v1278 = vpack.c.b16 %v1104, %v1098
    %v1279 = vpack.c.b16 %v1111, %v1105
    %v1280 = vpack.c.b16 %v1112, %v1106
    %v1281 = vpack.c.b16 %v1113, %v1107
    %v1282 = vpack.c.b16 %v1114, %v1108
    %v1283 = vpack.c.b16 %v1115, %v1109
    %v1284 = vpack.c.b16 %v1116, %v1110
    %v1285 = vpack.c.b16 %v1123, %v1117
    %v1286 = vpack.c.b16 %v1124, %v1118
    %v1287 = vpack.c.b16 %v1125, %v1119
    %v1288 = vpack.c.b16 %v1126, %v1120
    %v1289 = vpack.c.b16 %v1127, %v1121
    %v1290 = vpack.c.b16 %v1128, %v1122
    %v1291 = vpack.c.b16 %v1135, %v1129
    %v1292 = vpack.c.b16 %v1136, %v1130
    %v1293 = vpack.c.b16 %v1137, %v1131
    %v1294 = vpack.c.b16 %v1138, %v1132
    %v1295 = vpack.c.b16 %v1139, %v1133
    %v1296 = vpack.c.b16 %v1140, %v1134
    %v1297 = vpack.c.b16 %v1147, %v1141
    %v1298 = vpack.c.b16 %v1148, %v1142
    %v1299 = vpack.c.b16 %v1149, %v1143
    %v1300 = vpack.c.b16 %v1150, %v1144
    %v1301 = vpack.c.b16 %v1151, %v1145
    %v1302 = vpack.c.b16 %v1152, %v1146
    %v1303 = vpack.c.b16 %v1159, %v1153
    %v1304 = vpack.c.b16 %v1160, %v1154
    %v1305 = vpack.c.b16 %v1161, %v1155
    %v1306 = vpack.c.b16 %v1162, %v1156
    %v1307 = vpack.c.b16 %v1163, %v1157
    %v1308 = vpack.c.b16 %v1164, %v1158
    %v1309 = vpack.c.b16 %v1171, %v1165
    %v1310 = vpack.c.b16 %v1172, %v1166
    %v1311 = vpack.c.b16 %v1173, %v1167
    %v1312 = vpack.c.b16 %v1174, %v1168
    %v1313 = vpack.c.b16 %v1175, %v1169
    %v1314 = vpack.c.b16 %v1176, %v1170
    %v1315 = vpack.c.b16 %v1183, %v1177
    %v1316 = vpack.c.b16 %v1184, %v1178
    %v1317 = vpack.c.b16 %v1185, %v1179
    %v1318 = vpack.c.b16 %v1186, %v1180
    %v1319 = vpack.c.b16 %v1187, %v1181
    %v1320 = vpack.c.b16 %v1188, %v1182
    %v1321 = vpack.c.b16 %v1195, %v1189
    %v1322 = vpack.c.b16 %v1196, %v1190
    %v1323 = vpack.c.b16 %v1197, %v1191
    %v1324 = vpack.c.b16 %v1198, %v1192
    %v1325 = vpack.c.b16 %v1199, %v1193
    %v1326 = vpack.c.b16 %v1200, %v1194
    %v1327 = vpack.c.b16 %v1207, %v1201
    %v1328 = vpack.c.b16 %v1208, %v1202
    %v1329 = vpack.c.b16 %v1209, %v1203
    %v1330 = vpack.c.b16 %v1210, %v1204
    %v1331 = vpack.c.b16 %v1211, %v1205
    %v1332 = vpack.c.b16 %v1212, %v1206
    %v1333 = vpack.c.b16 %v1219, %v1213
    %v1334 = vpack.c.b16 %v1220, %v1214
    %v1335 = vpack.c.b16 %v1221, %v1215
    %v1336 = vpack.c.b16 %v1222, %v1216
    %v1337 = vpack.c.b16 %v1223, %v1217
    %v1338 = vpack.c.b16 %v1224, %v1218
    %v1339 = vpack.c.b16 %v1231, %v1225
    %v1340 = vpack.c.b16 %v1232, %v1226
    %v1341 = vpack.c.b16 %v1233, %v1227
    %v1342 = vpack.c.b16 %v1234, %v1228
    %v1343 = vpack.c.b16 %v1235, %v1229
    %v1344 = vpack.c.b16 %v1236, %v1230
    %v1345 = vpack.c.b16 %v1243, %v1237
    %v1346 = vpack.c.b16 %v1244, %v1238
    %v1347 = vpack.c.b16 %v1245, %v1239
    %v1348 = vpack.c.b16 %v1246, %v1240
    %v1349 = vpack.c.b16 %v1247, %v1241
    %v1350 = vpack.c.b16 %v1248, %v1242
    %v1351 = vpack.c.b16 %v1255, %v1249
    %v1352 = vpack.c.b16 %v1256, %v1250
    %v1353 = vpack.c.b16 %v1257, %v1251
    %v1354 = vpack.c.b16 %v1258, %v1252
    %v1355 = vpack.c.b16 %v1259, %v1253
    %v1356 = vpack.c.b16 %v1260, %v1254
    %1453 = vmatprep.subr.bf16.mxu0 %v1304
    %1454 = vmatpush1.bf16.msra.mxu0 %v1303
    %1455 = vmatprep.subr.bf16.mxu0 %v1298
    %1456 = vmatpush1.bf16.msra.mxu0 %v1297
    %1457 = vmatprep.subr.bf16.mxu0 %v1292
    %1458 = vmatpush1.bf16.msra.mxu0 %v1291
    %1459 = vmatprep.subr.bf16.mxu0 %v1286
    %1460 = vmatpush1.bf16.msra.mxu0 %v1285
    %1461 = vmatprep.subr.bf16.mxu0 %v1280
    %1462 = vmatpush1.bf16.msra.mxu0 %v1279
    %1463 = vmatprep.subr.bf16.mxu0 %v1274
    %1464 = vmatpush1.bf16.msra.mxu0 %v1273
    %1465 = vmatprep.subr.bf16.mxu0 %v1268
    %1466 = vmatpush1.bf16.msra.mxu0 %v1267
    %1467 = vmatprep.subr.bf16.mxu0 %v1262
    %1468 = vmatpush1.bf16.msra.mxu0 %v1261
    %1469 = vmatprep.subr.bf16.mxu0 %v1352
    %1470 = vmatpush2.bf16.msra.mxu0 %v1351
    %1471 = vmatprep.subr.bf16.mxu0 %v1346
    %1472 = vmatpush2.bf16.msra.mxu0 %v1345
    %1473 = vmatprep.subr.bf16.mxu0 %v1340
    %1474 = vmatpush2.bf16.msra.mxu0 %v1339
    %1475 = vmatprep.subr.bf16.mxu0 %v1334
    %1476 = vmatpush2.bf16.msra.mxu0 %v1333
    %1477 = vmatprep.subr.bf16.mxu0 %v1328
    %1478 = vmatpush2.bf16.msra.mxu0 %v1327
    %1479 = vmatprep.subr.bf16.mxu0 %v1322
    %1480 = vmatpush2.bf16.msra.mxu0 %v1321
    %1481 = vmatprep.subr.bf16.mxu0 %v1316
    %1482 = vmatpush2.bf16.msra.mxu0 %v1315
    %1483 = vmatprep.subr.bf16.mxu0 %v1310
    %1484 = vmatpush2.bf16.msra.mxu0 %v1309
    %1485 = vmatprep.mubr.bf16.mxu0 %v876
    %1486 = vmatmul.mubr.bf16.gmra.mxu0 %v875
    %v1487 = vpop.f32.mrf.mxu0
    %v1488 = vadd.f32 0.0, %v1487
    %v1489 = vpop.f32.mrf.mxu0
    %v1490 = vadd.f32 0.0, %v1489
    %v1491 = vpop.f32.mrf.mxu0
    %v1492 = vpop.f32.mrf.mxu0
    %1493 = vdwg.mxu0
    %1494 = vmatprep.subr.bf16.mxu0 %v1306
    %1495 = vmatpush1.bf16.msra.mxu0 %v1305
    %1496 = vmatprep.subr.bf16.mxu0 %v1300
    %1497 = vmatpush1.bf16.msra.mxu0 %v1299
    %1498 = vmatprep.subr.bf16.mxu0 %v1294
    %1499 = vmatpush1.bf16.msra.mxu0 %v1293
    %1500 = vmatprep.subr.bf16.mxu0 %v1288
    %1501 = vmatpush1.bf16.msra.mxu0 %v1287
    %1502 = vmatprep.subr.bf16.mxu0 %v1282
    %1503 = vmatpush1.bf16.msra.mxu0 %v1281
    %1504 = vmatprep.subr.bf16.mxu0 %v1276
    %1505 = vmatpush1.bf16.msra.mxu0 %v1275
    %1506 = vmatprep.subr.bf16.mxu0 %v1270
    %1507 = vmatpush1.bf16.msra.mxu0 %v1269
    %1508 = vmatprep.subr.bf16.mxu0 %v1264
    %1509 = vmatpush1.bf16.msra.mxu0 %v1263
    %1510 = vmatprep.subr.bf16.mxu0 %v1354
    %1511 = vmatpush2.bf16.msra.mxu0 %v1353
    %1512 = vmatprep.subr.bf16.mxu0 %v1348
    %1513 = vmatpush2.bf16.msra.mxu0 %v1347
    %1514 = vmatprep.subr.bf16.mxu0 %v1342
    %1515 = vmatpush2.bf16.msra.mxu0 %v1341
    %1516 = vmatprep.subr.bf16.mxu0 %v1336
    %1517 = vmatpush2.bf16.msra.mxu0 %v1335
    %1518 = vmatprep.subr.bf16.mxu0 %v1330
    %1519 = vmatpush2.bf16.msra.mxu0 %v1329
    %1520 = vmatprep.subr.bf16.mxu0 %v1324
    %1521 = vmatpush2.bf16.msra.mxu0 %v1323
    %1522 = vmatprep.subr.bf16.mxu0 %v1318
    %1523 = vmatpush2.bf16.msra.mxu0 %v1317
    %1524 = vmatprep.subr.bf16.mxu0 %v1312
    %1525 = vmatpush2.bf16.msra.mxu0 %v1311
    %1526 = vmatprep.mubr.bf16.mxu0 %v876
    %1527 = vmatmul.mubr.bf16.gmra.mxu0 %v875
    %v1528 = vpop.f32.mrf.mxu0
    %v1529 = vadd.f32 0.0, %v1528
    %v1530 = vpop.f32.mrf.mxu0
    %v1531 = vadd.f32 0.0, %v1530
    %v1532 = vpop.f32.mrf.mxu0
    %v1533 = vpop.f32.mrf.mxu0
    %1534 = vdwg.mxu0
    %1535 = vmatprep.subr.bf16.mxu0 %v1308
    %1536 = vmatpush1.bf16.msra.mxu0 %v1307
    %1537 = vmatprep.subr.bf16.mxu0 %v1302
    %1538 = vmatpush1.bf16.msra.mxu0 %v1301
    %1539 = vmatprep.subr.bf16.mxu0 %v1296
    %1540 = vmatpush1.bf16.msra.mxu0 %v1295
    %1541 = vmatprep.subr.bf16.mxu0 %v1290
    %1542 = vmatpush1.bf16.msra.mxu0 %v1289
    %1543 = vmatprep.subr.bf16.mxu0 %v1284
    %1544 = vmatpush1.bf16.msra.mxu0 %v1283
    %1545 = vmatprep.subr.bf16.mxu0 %v1278
    %1546 = vmatpush1.bf16.msra.mxu0 %v1277
    %1547 = vmatprep.subr.bf16.mxu0 %v1272
    %1548 = vmatpush1.bf16.msra.mxu0 %v1271
    %1549 = vmatprep.subr.bf16.mxu0 %v1266
    %1550 = vmatpush1.bf16.msra.mxu0 %v1265
    %1551 = vmatprep.subr.bf16.mxu0 %v1356
    %1552 = vmatpush2.bf16.msra.mxu0 %v1355
    %1553 = vmatprep.subr.bf16.mxu0 %v1350
    %1554 = vmatpush2.bf16.msra.mxu0 %v1349
    %1555 = vmatprep.subr.bf16.mxu0 %v1344
    %1556 = vmatpush2.bf16.msra.mxu0 %v1343
    %1557 = vmatprep.subr.bf16.mxu0 %v1338
    %1558 = vmatpush2.bf16.msra.mxu0 %v1337
    %1559 = vmatprep.subr.bf16.mxu0 %v1332
    %1560 = vmatpush2.bf16.msra.mxu0 %v1331
    %1561 = vmatprep.subr.bf16.mxu0 %v1326
    %1562 = vmatpush2.bf16.msra.mxu0 %v1325
    %1563 = vmatprep.subr.bf16.mxu0 %v1320
    %1564 = vmatpush2.bf16.msra.mxu0 %v1319
    %1565 = vmatprep.subr.bf16.mxu0 %v1314
    %1566 = vmatpush2.bf16.msra.mxu0 %v1313
    %1567 = vmatprep.mubr.bf16.mxu0 %v876
    %1568 = vmatmul.mubr.bf16.gmra.mxu0 %v875
    %v1569 = vpop.f32.mrf.mxu0
    %v1570 = vadd.f32 0.0, %v1569
    %v1571 = vpop.f32.mrf.mxu0
    %v1572 = vadd.f32 0.0, %v1571
    %v1573 = vpop.f32.mrf.mxu0
    %v1574 = vpop.f32.mrf.mxu0
    %1575 = vdwg.mxu0
    %v1580 = vcombine.low %v1488, %v1490
    %v1581 = vcombine.low %v1529, %v1531
    %v1583 = vunpack.c.l.s4 1966171168
    %v1584 = vunpack.c.0.s8 %v1583
    %v1585 = vlaneseq
    %v1586 = vshrl.u32 %v1585, 7
    %v1587 = vsub.s32 %v1584, %v1586
    %v1588 = vrot.slane %v1580, %v1587
    %v1590 = vunpack.c.l.s4 1966171168
    %v1591 = vunpack.c.0.s8 %v1590
    %v1592 = vlaneseq
    %v1593 = vshrl.u32 %v1592, 7
    %v1594 = vsub.s32 %v1591, %v1593
    %v1595 = vrot.slane %v1581, %v1594
    %v1596 = vcombine.low %v1588, %v1595
    %v1598 = vunpack.c.l.s4 1966171168
    %v1599 = vunpack.c.0.s8 %v1598
    %v1600 = vlaneseq
    %v1601 = vshrl.u32 %v1600, 7
    %v1602 = vsub.s32 %v1599, %v1601
    %v1603 = vrot.slane %v1596, %v1602
    %v1605 = vadd.f32 %v863, %v1603
    %v1606 = vxor.u32 %v1605, 2147483648
    %v1607 = vmul.f32 %v1606, 1.442695
    %v1608 = vpow.pop %v1607
    %v1609 = vadd.f32 %v1608, 1.0
    %v1610 = vrcp.pop %v1609
    %v1611 = vmul.f32 1.0, %v1610
    %v1613 = vlaneseq
    %v1614 = vshrl.u32 %v1613, 7
    %v1615 = vsub.s32 0, %v1614
    %v1616 = vrot.slane %v861, %v1615
    %v1617 = vlaneseq
    %v1618 = vshrl.u32 %v1617, 7
    %v1619 = vsub.s32 1, %v1618
    %v1620 = vrot.slane %v861, %v1619
    %v1623 = vadd.f32 %v1570, %v1616
    %v1624 = vadd.f32 %v1572, %v1620
    %v1627 = vcombine.low %v1623, %v1624
    %v1629 = vunpack.c.l.s4 1966171168
    %v1630 = vunpack.c.0.s8 %v1629
    %v1631 = vlaneseq
    %v1632 = vshrl.u32 %v1631, 7
    %v1633 = vsub.s32 %v1630, %v1632
    %v1634 = vrot.slane %v1627, %v1633
    %v1636 = vunpack.c.l.s4 1966171168
    %v1637 = vunpack.c.0.s8 %v1636
    %v1638 = vlaneseq
    %v1639 = vshrl.u32 %v1638, 7
    %v1640 = vsub.s32 %v1637, %v1639
    %v1641 = vrot.slane %v1634, %v1640
    %v1643 = vmul.f32 %v1611, %v1641
    %v1645 = vrot.slane %v863, 4
    %v1647 = vadd.f32 %v1645, %v1643
    %v1648 = vtanh.pop %v1647
    %v1650 = vrot.slane %v1611, 2
    %v1652 = vsub.f32 1.0, %v1650
    %v1653 = vmul.f32 %v1652, %v1648
    %v1654 = vmul.f32 %v1650, %v862
    %v1655 = vadd.f32 %v1653, %v1654
    %vm1656 = vcmp.lt.s32.totalorder %v856, 256
    %vm1657 = vmand %vm857, %vm1656
    %1658 = vst.msk [vmem:[#allocation8] sm:$0x3] %vm1657, %v1655
    // Predicated region
    $region34: #{_encode_sequence.1} parent=1 // pred_check
      _
    $region35: #{_encode_sequence.1} parent=1 // pred_check_branch
      %1660 = sbr.rel (0) target = $region37
    $region36: #{_encode_sequence.1} parent=1 // pred_region
      %s1662 = ssub.s32 32, 32
      %1663 = vsyncadd [#allocation5], %s1662
      %s1665 = sshll.u32 [#allocation8], 4
      %s1666 = int_to_ptr.vmem [resolvable:$true] %s1665
      %1668 = dma.vmem_to_hbm [thread:$0]  %s1666, 32, %s6, [#allocation5]
    $region37: #{_encode_sequence.1} parent=1 // pred_fallthru
      _
    // Predicated region
    $region38: #{_encode_sequence.1} parent=1 // pred_check
      _
    $region39: #{_encode_sequence.1} parent=1 // pred_check_branch
      %1670 = sbr.rel (0) target = $region41
    $region40: #{_encode_sequence.1} parent=1 // pred_region
      %1671 = dma.done [#allocation5], 32
    $region41: #{_encode_sequence.1} parent=1 // pred_fallthru
      _
    %1672 = vsyncpa [#allocation4], 1
    %1673 = vsyncpa [#allocation7], 1
    %1674 = vsyncpa [#allocation5], 1

</llo_original>
